<compile_context>
chip_gen: v6e
topology: v6e:2x2x1
jax: 0.10.0
libtpu: 0.0.40
codegen_flags: <defaults>
</compile_context>

<pallas_src>
import functools

import jax
import jax.numpy as jnp
from jax.experimental import pallas as pl
from jax.experimental.pallas import tpu as pltpu


def _logic_or_kernel(x1_ref, x2_ref, w1a_ref, w1b_ref, w2_ref, o_ref):
    # x1_ref : (TB, D_half)        first half of the concatenated input (f32)
    # x2_ref : (TB, D_half)        second half (f32)
    # w1a_ref: (D_half, D_hidden)  top half of Linear1.weight.T   (compute dtype)
    # w1b_ref: (D_half, D_hidden)  bottom half of Linear1.weight.T
    # w2_ref : (D_hidden, D_out)   Linear2.weight.T
    # o_ref  : (TB, D_out)         f32 output
    cdt = w1a_ref.dtype
    x1 = x1_ref[...].astype(cdt)          # cast in-kernel: hidden under DMA
    x2 = x2_ref[...].astype(cdt)
    h = jnp.dot(x1, w1a_ref[...], preferred_element_type=jnp.float32)
    h = h + jnp.dot(x2, w1b_ref[...], preferred_element_type=jnp.float32)
    h = jnp.maximum(h, 0.0)               # ReLU in f32 (VPU slot, free)
    out = jnp.dot(h.astype(cdt), w2_ref[...],
                  preferred_element_type=jnp.float32)
    o_ref[...] = out.astype(o_ref.dtype)


def prepare_logic_or_weights(w1, w2, *, compute_dtype=jnp.bfloat16):
    """One-time weight preparation (hoisted out of the per-call path).

    w1: (output_dim, input_dim)   PyTorch Linear layout
    w2: (output_dim, output_dim)
    Returns (w1a, w1b, w2t) in compute_dtype, already transposed so the kernel
    can use them as right-hand matmul operands.
    """
    d_out, d_in = w1.shape
    d_half = d_in // 2
    w1t = jnp.asarray(w1).T.astype(compute_dtype)    # (d_in, d_out)
    w1a = w1t[:d_half]                                # (d_half, d_out)
    w1b = w1t[d_half:]                                # (d_half, d_out)
    w2t = jnp.asarray(w2).T.astype(compute_dtype)     # (d_out, d_out)
    return w1a, w1b, w2t


@functools.partial(jax.jit, static_argnames=("block_b",))
def logic_or_forward(x1, x2, w1a, w1b, w2t, *, block_b=1024):
    """x1, x2: (B, input_dim//2) float32; weights from prepare_logic_or_weights."""
    assert x1.shape[0] == x2.shape[0]
    B, d_half = x1.shape
    d_hidden = w1a.shape[1]       # output_dim of layer 1 (64)
    d_out = w2t.shape[1]          # true output_dim (64)

    # Batch tile: large enough to amortize per-step overhead, small enough to
    # double-buffer comfortably inside v7x's 64 MiB VMEM.
    tb = B if B <= block_b else block_b
    grid = (pl.cdiv(B, tb),)

    out = pl.pallas_call(
        _logic_or_kernel,
        out_shape=jax.ShapeDtypeStruct((B, d_out), jnp.float32),
        grid_spec=pltpu.PrefetchScalarGridSpec(
            num_scalar_prefetch=0,
            grid=grid,
            in_specs=[
                pl.BlockSpec((tb, d_half), lambda i: (i, 0)),        # x1 tile
                pl.BlockSpec((tb, d_half), lambda i: (i, 0)),        # x2 tile
                pl.BlockSpec((d_half, d_hidden), lambda i: (0, 0)),  # W1a (resident)
                pl.BlockSpec((d_half, d_hidden), lambda i: (0, 0)),  # W1b (resident)
                pl.BlockSpec((d_hidden, d_out), lambda i: (0, 0)),   # W2  (resident)
            ],
            out_specs=pl.BlockSpec((tb, d_out), lambda i: (i, 0)),
        ),
        compiler_params=pltpu.CompilerParams(
            dimension_semantics=("parallel",),
        ),
    )(x1, x2, w1a, w1b, w2t)

    return out


if __name__ == "__main__":
    input_dim = 128   # module default
    output_dim = 64   # module default
    batch = 8         # small example batch

    key = jax.random.PRNGKey(0)
    k1, k2, kw1, kw2 = jax.random.split(key, 4)

    # Inputs: forward concatenates x1 and x2 along dim=1 to produce input_dim.
    x1 = jax.random.normal(k1, (batch, input_dim // 2), dtype=jnp.float32)
    x2 = jax.random.normal(k2, (batch, input_dim // 2), dtype=jnp.float32)

    # Deterministic params (PyTorch Linear layout: (out_features, in_features)),
    # uniform(-1/sqrt(fan_in), 1/sqrt(fan_in)) like torch.nn.Linear's default.
    b1 = 1.0 / jnp.sqrt(jnp.float32(input_dim))
    b2 = 1.0 / jnp.sqrt(jnp.float32(output_dim))
    w1 = jax.random.uniform(kw1, (output_dim, input_dim), jnp.float32, -b1, b1)
    w2 = jax.random.uniform(kw2, (output_dim, output_dim), jnp.float32, -b2, b2)

    # Pure-JAX f32 reference of the same math.
    x = jnp.concatenate([x1, x2], axis=1)
    ref = jnp.maximum(x @ w1.T, 0.0) @ w2.T

    # 1) f32 path: exact-ish match.
    w1a_f32, w1b_f32, w2t_f32 = prepare_logic_or_weights(
        w1, w2, compute_dtype=jnp.float32)
    out_f32 = logic_or_forward(x1, x2, w1a_f32, w1b_f32, w2t_f32)
    out_f32 = jax.block_until_ready(out_f32)
    assert out_f32.shape == (batch, output_dim)
    assert jnp.allclose(out_f32, ref, atol=1e-5, rtol=1e-5)

    # 2) bf16-operand path (MXU-native on v6e/v7x): relaxed tolerance.
    w1a_bf, w1b_bf, w2t_bf = prepare_logic_or_weights(
        w1, w2, compute_dtype=jnp.bfloat16)
    out_bf = logic_or_forward(x1, x2, w1a_bf, w1b_bf, w2t_bf)
    out_bf = jax.block_until_ready(out_bf)
    assert out_bf.shape == (batch, output_dim)
    assert jnp.allclose(out_bf, ref, atol=5e-2, rtol=5e-2)

    print("KERNEL_OK")
</pallas_src>

<mosaic_0001>
module attributes {stable_mosaic.version = 11 : i64} {
  func.func @_logic_or_kernel(%arg0: i32, %arg1: memref<8x64xf32, #tpu.memory_space<vmem>>, %arg2: memref<8x64xf32, #tpu.memory_space<vmem>>, %arg3: memref<64x64xf32, #tpu.memory_space<vmem>>, %arg4: memref<64x64xf32, #tpu.memory_space<vmem>>, %arg5: memref<64x64xf32, #tpu.memory_space<vmem>>, %arg6: memref<8x64xf32, #tpu.memory_space<vmem>>) attributes {dimension_semantics = [#tpu.dimension_semantics<parallel>], iteration_bounds = array<i64: 1>, scalar_prefetch = 0 : i64, scratch_operands = 0 : i64, tpu.core_type = #tpu.core_type<tc>, window_params = [{transform_indices = @transform_0, window_bounds = array<i64: 8, 64>}, {transform_indices = @transform_1, window_bounds = array<i64: 8, 64>}, {pipeline_mode = #tpu.pipeline_mode<synchronous>, transform_indices = @transform_2, window_bounds = array<i64: 64, 64>}, {pipeline_mode = #tpu.pipeline_mode<synchronous>, transform_indices = @transform_3, window_bounds = array<i64: 64, 64>}, {pipeline_mode = #tpu.pipeline_mode<synchronous>, transform_indices = @transform_4, window_bounds = array<i64: 64, 64>}, {transform_indices = @transform_5, window_bounds = array<i64: 8, 64>}]} {
    %c0 = arith.constant 0 : index
    %c0_0 = arith.constant 0 : index
    %0 = vector.load %arg1[%c0, %c0_0] : memref<8x64xf32, #tpu.memory_space<vmem>>, vector<8x64xf32>
    %c0_1 = arith.constant 0 : index
    %c0_2 = arith.constant 0 : index
    %1 = vector.load %arg2[%c0_1, %c0_2] : memref<8x64xf32, #tpu.memory_space<vmem>>, vector<8x64xf32>
    %c0_3 = arith.constant 0 : index
    %c0_4 = arith.constant 0 : index
    %2 = vector.load %arg3[%c0_3, %c0_4] : memref<64x64xf32, #tpu.memory_space<vmem>>, vector<64x64xf32>
    %cst = arith.constant dense<0.000000e+00> : vector<8x64xf32>
    %3 = tpu.matmul %0, %2, %cst {dimension_numbers = #tpu.dot_dimension_numbers<[1], [0], [0], [1], [0, 0, 1, 1], [], []>} : vector<8x64xf32>, vector<64x64xf32>, vector<8x64xf32> -> vector<8x64xf32>
    %c0_5 = arith.constant 0 : index
    %c0_6 = arith.constant 0 : index
    %4 = vector.load %arg4[%c0_5, %c0_6] : memref<64x64xf32, #tpu.memory_space<vmem>>, vector<64x64xf32>
    %cst_7 = arith.constant dense<0.000000e+00> : vector<8x64xf32>
    %5 = tpu.matmul %1, %4, %cst_7 {dimension_numbers = #tpu.dot_dimension_numbers<[1], [0], [0], [1], [0, 0, 1, 1], [], []>} : vector<8x64xf32>, vector<64x64xf32>, vector<8x64xf32> -> vector<8x64xf32>
    %6 = arith.addf %3, %5 : vector<8x64xf32>
    %cst_8 = arith.constant 0.000000e+00 : f32
    %7 = vector.broadcast %cst_8 : f32 to vector<8x64xf32>
    %8 = arith.maximumf %6, %7 : vector<8x64xf32>
    %c0_9 = arith.constant 0 : index
    %c0_10 = arith.constant 0 : index
    %9 = vector.load %arg5[%c0_9, %c0_10] : memref<64x64xf32, #tpu.memory_space<vmem>>, vector<64x64xf32>
    %cst_11 = arith.constant dense<0.000000e+00> : vector<8x64xf32>
    %10 = tpu.matmul %8, %9, %cst_11 {dimension_numbers = #tpu.dot_dimension_numbers<[1], [0], [0], [1], [0, 0, 1, 1], [], []>} : vector<8x64xf32>, vector<64x64xf32>, vector<8x64xf32> -> vector<8x64xf32>
    %c0_12 = arith.constant 0 : index
    %c0_13 = arith.constant 0 : index
    %11 = vector.load %arg6[%c0_12, %c0_13] : memref<8x64xf32, #tpu.memory_space<vmem>>, vector<8x64xf32>
    tpu.vector_store %arg6[%c0_12, %c0_13], %10 {strides = array<i32>} : memref<8x64xf32, #tpu.memory_space<vmem>>, vector<8x64xf32>,
    return
  }
  func.func @transform_0(%arg0: i32) -> (i32, i32) {
    %c0_i32 = arith.constant 0 : i32
    %c0_i32_0 = arith.constant 0 : i32
    return %arg0, %c0_i32 : i32, i32
  }
  func.func @transform_1(%arg0: i32) -> (i32, i32) {
    %c0_i32 = arith.constant 0 : i32
    %c0_i32_0 = arith.constant 0 : i32
    return %arg0, %c0_i32 : i32, i32
  }
  func.func @transform_2(%arg0: i32) -> (i32, i32) {
    %c0_i32 = arith.constant 0 : i32
    %c0_i32_0 = arith.constant 0 : i32
    %c0_i32_1 = arith.constant 0 : i32
    return %c0_i32, %c0_i32_0 : i32, i32
  }
  func.func @transform_3(%arg0: i32) -> (i32, i32) {
    %c0_i32 = arith.constant 0 : i32
    %c0_i32_0 = arith.constant 0 : i32
    %c0_i32_1 = arith.constant 0 : i32
    return %c0_i32, %c0_i32_0 : i32, i32
  }
  func.func @transform_4(%arg0: i32) -> (i32, i32) {
    %c0_i32 = arith.constant 0 : i32
    %c0_i32_0 = arith.constant 0 : i32
    %c0_i32_1 = arith.constant 0 : i32
    return %c0_i32, %c0_i32_0 : i32, i32
  }
  func.func @transform_5(%arg0: i32) -> (i32, i32) {
    %c0_i32 = arith.constant 0 : i32
    %c0_i32_0 = arith.constant 0 : i32
    return %arg0, %c0_i32 : i32, i32
  }
}

</mosaic_0001>

<llo_original>
// kernel: logic_or_forward.1
$region0: #{logic_or_forward.1}
  #allocation0 [shape = 'u32[]', space=smem, size = 0x4, offset = 0x4, fixed_abs, tag = 'smem constant byte address 0x4 - core index']
  #allocation1 [shape = 'u32[144,128]{1,0:T(1,128)}', space=vmem, size = 0x12000, scoped, tag = 'internal scratch']
  %s0 = inlined_call_operand.hbm [shape: f32[8,64], index: 0, kind: input, shape index: {}]
  %s1 = inlined_call_operand.hbm [shape: f32[8,64], index: 1, kind: input, shape index: {}]
  %s2 = inlined_call_operand.hbm [shape: f32[64,64], index: 2, kind: input, shape index: {}]
  %s3 = inlined_call_operand.hbm [shape: f32[64,64], index: 3, kind: input, shape index: {}]
  %s4 = inlined_call_operand.hbm [shape: f32[64,64], index: 4, kind: input, shape index: {}]
  %s5 = inlined_call_operand.hbm [shape: f32[8,64], index: 5, kind: output, shape index: {}]
  %s6 = sld [smem:[#allocation0]]
  $region50: #{logic_or_forward.1} parent=0
    _
  %s8 = ssub.s32 1, %s6
  %s9 = scalar_select 0, %s8, %s6
  $region1: #{logic_or_forward.1} parent=0
    #allocation2 [shape = 'u8[4096]{0}', space=vmem, size = 0x1000, scoped, tag = 'input window, operand 0, single buffered']
    #allocation3 [shape = 's32[1]{0}', space=sflag, size = 0x4, scoped, tag = 'scoped memory for logic_or_forward.1']
    #allocation4 [shape = 's32[1]{0}', space=sflag, size = 0x4, scoped, tag = 'scoped memory for logic_or_forward.1']
    #allocation5 [shape = 'u8[4096]{0}', space=vmem, size = 0x1000, scoped, tag = 'input window, operand 1, single buffered']
    #allocation6 [shape = 's32[1]{0}', space=sflag, size = 0x4, scoped, tag = 'scoped memory for logic_or_forward.1']
    #allocation7 [shape = 'u8[32768]{0}', space=vmem, size = 0x8000, scoped, tag = 'input window, operand 2, single buffered']
    #allocation8 [shape = 'u8[32768]{0}', space=vmem, size = 0x8000, scoped, tag = 'input window, operand 3, single buffered']
    #allocation9 [shape = 's32[1]{0}', space=sflag, size = 0x4, scoped, tag = 'scoped memory for logic_or_forward.1']
    #allocation10 [shape = 'u8[32768]{0}', space=vmem, size = 0x8000, scoped, tag = 'input window, operand 4, single buffered']
    #allocation11 [shape = 'u8[4096]{0}', space=vmem, size = 0x1000, scoped, tag = 'output window, operand 0, single buffered']
    %10 = vsyncpa [#allocation3], 0
    %11 = vsyncpa [#allocation6], 0
    %12 = vsyncpa [#allocation9], 0
    %13 = vsyncpa [#allocation4], 0
    // Predicated region
    $region2: #{logic_or_forward.1} parent=1 // pred_check
      _
    $region3: #{logic_or_forward.1} parent=1 // pred_check_branch
      %15 = sbr.rel (0) target = $region5
    $region4: #{logic_or_forward.1} parent=1 // pred_region
      %s17 = ssub.s32 128, 128
      %18 = vsyncadd [#allocation3], %s17
      %s20 = sshll.u32 [#allocation2], 4
      %s21 = int_to_ptr.vmem [resolvable:$true] %s20
      %23 = dma.hbm_to_vmem [thread:$0]  %s0, 128, %s21, [#allocation3]
    $region5: #{logic_or_forward.1} parent=1 // pred_fallthru
      _
    // Predicated region
    $region6: #{logic_or_forward.1} parent=1 // pred_check
      _
    $region7: #{logic_or_forward.1} parent=1 // pred_check_branch
      %25 = sbr.rel (0) target = $region9
    $region8: #{logic_or_forward.1} parent=1 // pred_region
      %s27 = ssub.s32 128, 128
      %28 = vsyncadd [#allocation6], %s27
      %s30 = sshll.u32 [#allocation5], 4
      %s31 = int_to_ptr.vmem [resolvable:$true] %s30
      %33 = dma.hbm_to_vmem [thread:$0]  %s1, 128, %s31, [#allocation6]
    $region9: #{logic_or_forward.1} parent=1 // pred_fallthru
      _
    // Predicated region
    $region10: #{logic_or_forward.1} parent=1 // pred_check
      _
    $region11: #{logic_or_forward.1} parent=1 // pred_check_branch
      %35 = sbr.rel (0) target = $region13
    $region12: #{logic_or_forward.1} parent=1 // pred_region
      %s37 = ssub.s32 1024, 1024
      %38 = vsyncadd [#allocation6], %s37
      %s39 = sshll.u32 [#allocation7], 4
      %s40 = int_to_ptr.vmem [resolvable:$true] %s39
      %45 = dma.hbm_to_vmem [thread:$0]  %s2, 1024, %s40, [#allocation6], 128, 128, 8
    $region13: #{logic_or_forward.1} parent=1 // pred_fallthru
      _
    // Predicated region
    $region14: #{logic_or_forward.1} parent=1 // pred_check
      _
    $region15: #{logic_or_forward.1} parent=1 // pred_check_branch
      %47 = sbr.rel (0) target = $region17
    $region16: #{logic_or_forward.1} parent=1 // pred_region
      %s49 = ssub.s32 1024, 1024
      %50 = vsyncadd [#allocation9], %s49
      %s51 = sshll.u32 [#allocation8], 4
      %s52 = int_to_ptr.vmem [resolvable:$true] %s51
      %57 = dma.hbm_to_vmem [thread:$0]  %s3, 1024, %s52, [#allocation9], 128, 128, 8
    $region17: #{logic_or_forward.1} parent=1 // pred_fallthru
      _
    // Predicated region
    $region18: #{logic_or_forward.1} parent=1 // pred_check
      _
    $region19: #{logic_or_forward.1} parent=1 // pred_check_branch
      %59 = sbr.rel (0) target = $region21
    $region20: #{logic_or_forward.1} parent=1 // pred_region
      %s61 = ssub.s32 1024, 1024
      %62 = vsyncadd [#allocation9], %s61
      %s63 = sshll.u32 [#allocation10], 4
      %s64 = int_to_ptr.vmem [resolvable:$true] %s63
      %69 = dma.hbm_to_vmem [thread:$0]  %s4, 1024, %s64, [#allocation9], 128, 128, 8
    $region21: #{logic_or_forward.1} parent=1 // pred_fallthru
      _
    // Predicated region
    $region22: #{logic_or_forward.1} parent=1 // pred_check
      _
    $region23: #{logic_or_forward.1} parent=1 // pred_check_branch
      %71 = sbr.rel (0) target = $region25
    $region24: #{logic_or_forward.1} parent=1 // pred_region
      %72 = dma.done [#allocation3], 128
    $region25: #{logic_or_forward.1} parent=1 // pred_fallthru
      _
    // Predicated region
    $region26: #{logic_or_forward.1} parent=1 // pred_check
      _
    $region27: #{logic_or_forward.1} parent=1 // pred_check_branch
      %74 = sbr.rel (0) target = $region29
    $region28: #{logic_or_forward.1} parent=1 // pred_region
      %75 = dma.done [#allocation6], 128
    $region29: #{logic_or_forward.1} parent=1 // pred_fallthru
      _
    // Predicated region
    $region30: #{logic_or_forward.1} parent=1 // pred_check
      _
    $region31: #{logic_or_forward.1} parent=1 // pred_check_branch
      %77 = sbr.rel (0) target = $region33
    $region32: #{logic_or_forward.1} parent=1 // pred_region
      %78 = dma.done [#allocation6], 1024
    $region33: #{logic_or_forward.1} parent=1 // pred_fallthru
      _
    // Predicated region
    $region34: #{logic_or_forward.1} parent=1 // pred_check
      _
    $region35: #{logic_or_forward.1} parent=1 // pred_check_branch
      %80 = sbr.rel (0) target = $region37
    $region36: #{logic_or_forward.1} parent=1 // pred_region
      %81 = dma.done [#allocation9], 1024
    $region37: #{logic_or_forward.1} parent=1 // pred_fallthru
      _
    // Predicated region
    $region38: #{logic_or_forward.1} parent=1 // pred_check
      _
    $region39: #{logic_or_forward.1} parent=1 // pred_check_branch
      %83 = sbr.rel (0) target = $region41
    $region40: #{logic_or_forward.1} parent=1 // pred_region
      %84 = dma.done [#allocation9], 1024
    $region41: #{logic_or_forward.1} parent=1 // pred_fallthru
      _
    %v85 = vld [vmem:[#allocation2] sm:$0xff]
    %v86 = vld [vmem:[#allocation5] sm:$0xff]
    %v87 = vld [vmem:[#allocation7] sm:$0xff]
    %v88 = vld [vmem:[#allocation7 + $0x8] sm:$0xff]
    %v89 = vld [vmem:[#allocation7 + $0x10] sm:$0xff]
    %v90 = vld [vmem:[#allocation7 + $0x18] sm:$0xff]
    %v91 = vld [vmem:[#allocation7 + $0x20] sm:$0xff]
    %v92 = vld [vmem:[#allocation7 + $0x28] sm:$0xff]
    %v93 = vld [vmem:[#allocation7 + $0x30] sm:$0xff]
    %v94 = vld [vmem:[#allocation7 + $0x38] sm:$0xff]
    %v95 = vld [vmem:[#allocation8] sm:$0xff]
    %v96 = vld [vmem:[#allocation8 + $0x8] sm:$0xff]
    %v97 = vld [vmem:[#allocation8 + $0x10] sm:$0xff]
    %v98 = vld [vmem:[#allocation8 + $0x18] sm:$0xff]
    %v99 = vld [vmem:[#allocation8 + $0x20] sm:$0xff]
    %v100 = vld [vmem:[#allocation8 + $0x28] sm:$0xff]
    %v101 = vld [vmem:[#allocation8 + $0x30] sm:$0xff]
    %v102 = vld [vmem:[#allocation8 + $0x38] sm:$0xff]
    %vm103 = vcmask 523264
    %v105 = vsel %vm103, %v86, 0
    %107 = vmatprep.subr.mxu0 0.0
    %108 = vmatpush1.msra.mxu0 0.0
    %109 = vmatprep.subr.mxu0 0.0
    %110 = vmatpush1.msra.mxu0 0.0
    %111 = vmatprep.subr.mxu0 0.0
    %112 = vmatpush1.msra.mxu0 0.0
    %113 = vmatprep.subr.mxu0 0.0
    %114 = vmatpush1.msra.mxu0 0.0
    %115 = vmatprep.subr.mxu0 0.0
    %116 = vmatpush1.msra.mxu0 0.0
    %117 = vmatprep.subr.mxu0 0.0
    %118 = vmatpush1.msra.mxu0 0.0
    %119 = vmatprep.subr.mxu0 0.0
    %120 = vmatpush1.msra.mxu0 0.0
    %121 = vmatprep.subr.mxu0 0.0
    %122 = vmatpush1.msra.mxu0 0.0
    %123 = vmatprep.subr.mxu0 0.0
    %124 = vmatpush1.msra.mxu0 %v102
    %125 = vmatprep.subr.mxu0 0.0
    %126 = vmatpush1.msra.mxu0 %v101
    %127 = vmatprep.subr.mxu0 0.0
    %128 = vmatpush1.msra.mxu0 %v100
    %129 = vmatprep.subr.mxu0 0.0
    %130 = vmatpush1.msra.mxu0 %v99
    %131 = vmatprep.subr.mxu0 0.0
    %132 = vmatpush1.msra.mxu0 %v98
    %133 = vmatprep.subr.mxu0 0.0
    %134 = vmatpush1.msra.mxu0 %v97
    %135 = vmatprep.subr.mxu0 0.0
    %136 = vmatpush1.msra.mxu0 %v96
    %137 = vmatprep.subr.mxu0 0.0
    %138 = vmatpush1.msra.mxu0 %v95
    %139 = vmatprep.subr.mxu0 0.0
    %140 = vmatpush2.msra.mxu0 0.0
    %141 = vmatprep.subr.mxu0 0.0
    %142 = vmatpush2.msra.mxu0 0.0
    %143 = vmatprep.subr.mxu0 0.0
    %144 = vmatpush2.msra.mxu0 0.0
    %145 = vmatprep.subr.mxu0 0.0
    %146 = vmatpush2.msra.mxu0 0.0
    %147 = vmatprep.subr.mxu0 0.0
    %148 = vmatpush2.msra.mxu0 0.0
    %149 = vmatprep.subr.mxu0 0.0
    %150 = vmatpush2.msra.mxu0 0.0
    %151 = vmatprep.subr.mxu0 0.0
    %152 = vmatpush2.msra.mxu0 0.0
    %153 = vmatprep.subr.mxu0 0.0
    %154 = vmatpush2.msra.mxu0 0.0
    %155 = vmatprep.subr.mxu0 0.0
    %156 = vmatpush2.msra.mxu0 0.0
    %157 = vmatprep.subr.mxu0 0.0
    %158 = vmatpush2.msra.mxu0 0.0
    %159 = vmatprep.subr.mxu0 0.0
    %160 = vmatpush2.msra.mxu0 0.0
    %161 = vmatprep.subr.mxu0 0.0
    %162 = vmatpush2.msra.mxu0 0.0
    %163 = vmatprep.subr.mxu0 0.0
    %164 = vmatpush2.msra.mxu0 0.0
    %165 = vmatprep.subr.mxu0 0.0
    %166 = vmatpush2.msra.mxu0 0.0
    %167 = vmatprep.subr.mxu0 0.0
    %168 = vmatpush2.msra.mxu0 0.0
    %169 = vmatprep.subr.mxu0 0.0
    %170 = vmatpush2.msra.mxu0 0.0
    %171 = vmatprep.mubr.f32.mxu0 0.0
    %172 = vmatmul.mubr.f32.gmra.mxu0 %v105
    %v173 = vpop.f32.mrf.mxu0
    %v174 = vadd.f32 0.0, %v173
    %v175 = vpop.f32.mrf.mxu0
    %176 = vdwg.mxu0
    %v178 = vsel %vm103, %v85, 0
    %180 = vmatprep.subr.mxu0 0.0
    %181 = vmatpush1.msra.mxu0 0.0
    %182 = vmatprep.subr.mxu0 0.0
    %183 = vmatpush1.msra.mxu0 0.0
    %184 = vmatprep.subr.mxu0 0.0
    %185 = vmatpush1.msra.mxu0 0.0
    %186 = vmatprep.subr.mxu0 0.0
    %187 = vmatpush1.msra.mxu0 0.0
    %188 = vmatprep.subr.mxu0 0.0
    %189 = vmatpush1.msra.mxu0 0.0
    %190 = vmatprep.subr.mxu0 0.0
    %191 = vmatpush1.msra.mxu0 0.0
    %192 = vmatprep.subr.mxu0 0.0
    %193 = vmatpush1.msra.mxu0 0.0
    %194 = vmatprep.subr.mxu0 0.0
    %195 = vmatpush1.msra.mxu0 0.0
    %196 = vmatprep.subr.mxu0 0.0
    %197 = vmatpush1.msra.mxu0 %v94
    %198 = vmatprep.subr.mxu0 0.0
    %199 = vmatpush1.msra.mxu0 %v93
    %200 = vmatprep.subr.mxu0 0.0
    %201 = vmatpush1.msra.mxu0 %v92
    %202 = vmatprep.subr.mxu0 0.0
    %203 = vmatpush1.msra.mxu0 %v91
    %204 = vmatprep.subr.mxu0 0.0
    %205 = vmatpush1.msra.mxu0 %v90
    %206 = vmatprep.subr.mxu0 0.0
    %207 = vmatpush1.msra.mxu0 %v89
    %208 = vmatprep.subr.mxu0 0.0
    %209 = vmatpush1.msra.mxu0 %v88
    %210 = vmatprep.subr.mxu0 0.0
    %211 = vmatpush1.msra.mxu0 %v87
    %212 = vmatprep.subr.mxu0 0.0
    %213 = vmatpush2.msra.mxu0 0.0
    %214 = vmatprep.subr.mxu0 0.0
    %215 = vmatpush2.msra.mxu0 0.0
    %216 = vmatprep.subr.mxu0 0.0
    %217 = vmatpush2.msra.mxu0 0.0
    %218 = vmatprep.subr.mxu0 0.0
    %219 = vmatpush2.msra.mxu0 0.0
    %220 = vmatprep.subr.mxu0 0.0
    %221 = vmatpush2.msra.mxu0 0.0
    %222 = vmatprep.subr.mxu0 0.0
    %223 = vmatpush2.msra.mxu0 0.0
    %224 = vmatprep.subr.mxu0 0.0
    %225 = vmatpush2.msra.mxu0 0.0
    %226 = vmatprep.subr.mxu0 0.0
    %227 = vmatpush2.msra.mxu0 0.0
    %228 = vmatprep.subr.mxu0 0.0
    %229 = vmatpush2.msra.mxu0 0.0
    %230 = vmatprep.subr.mxu0 0.0
    %231 = vmatpush2.msra.mxu0 0.0
    %232 = vmatprep.subr.mxu0 0.0
    %233 = vmatpush2.msra.mxu0 0.0
    %234 = vmatprep.subr.mxu0 0.0
    %235 = vmatpush2.msra.mxu0 0.0
    %236 = vmatprep.subr.mxu0 0.0
    %237 = vmatpush2.msra.mxu0 0.0
    %238 = vmatprep.subr.mxu0 0.0
    %239 = vmatpush2.msra.mxu0 0.0
    %240 = vmatprep.subr.mxu0 0.0
    %241 = vmatpush2.msra.mxu0 0.0
    %242 = vmatprep.subr.mxu0 0.0
    %243 = vmatpush2.msra.mxu0 0.0
    %244 = vmatprep.mubr.f32.mxu0 0.0
    %245 = vmatmul.mubr.f32.gmra.mxu0 %v178
    %v246 = vpop.f32.mrf.mxu0
    %v247 = vadd.f32 %v174, %v246
    %v248 = vpop.f32.mrf.mxu0
    %249 = vdwg.mxu0
    %v250 = vmax.f32 %v247, 0.0
    %v251 = vld [vmem:[#allocation10] sm:$0xff]
    %v252 = vld [vmem:[#allocation10 + $0x8] sm:$0xff]
    %v253 = vld [vmem:[#allocation10 + $0x10] sm:$0xff]
    %v254 = vld [vmem:[#allocation10 + $0x18] sm:$0xff]
    %v255 = vld [vmem:[#allocation10 + $0x20] sm:$0xff]
    %v256 = vld [vmem:[#allocation10 + $0x28] sm:$0xff]
    %v257 = vld [vmem:[#allocation10 + $0x30] sm:$0xff]
    %v258 = vld [vmem:[#allocation10 + $0x38] sm:$0xff]
    %v260 = vsel %vm103, %v250, 0
    %262 = vmatprep.subr.mxu0 0.0
    %263 = vmatpush1.msra.mxu0 0.0
    %264 = vmatprep.subr.mxu0 0.0
    %265 = vmatpush1.msra.mxu0 0.0
    %266 = vmatprep.subr.mxu0 0.0
    %267 = vmatpush1.msra.mxu0 0.0
    %268 = vmatprep.subr.mxu0 0.0
    %269 = vmatpush1.msra.mxu0 0.0
    %270 = vmatprep.subr.mxu0 0.0
    %271 = vmatpush1.msra.mxu0 0.0
    %272 = vmatprep.subr.mxu0 0.0
    %273 = vmatpush1.msra.mxu0 0.0
    %274 = vmatprep.subr.mxu0 0.0
    %275 = vmatpush1.msra.mxu0 0.0
    %276 = vmatprep.subr.mxu0 0.0
    %277 = vmatpush1.msra.mxu0 0.0
    %278 = vmatprep.subr.mxu0 0.0
    %279 = vmatpush1.msra.mxu0 %v258
    %280 = vmatprep.subr.mxu0 0.0
    %281 = vmatpush1.msra.mxu0 %v257
    %282 = vmatprep.subr.mxu0 0.0
    %283 = vmatpush1.msra.mxu0 %v256
    %284 = vmatprep.subr.mxu0 0.0
    %285 = vmatpush1.msra.mxu0 %v255
    %286 = vmatprep.subr.mxu0 0.0
    %287 = vmatpush1.msra.mxu0 %v254
    %288 = vmatprep.subr.mxu0 0.0
    %289 = vmatpush1.msra.mxu0 %v253
    %290 = vmatprep.subr.mxu0 0.0
    %291 = vmatpush1.msra.mxu0 %v252
    %292 = vmatprep.subr.mxu0 0.0
    %293 = vmatpush1.msra.mxu0 %v251
    %294 = vmatprep.subr.mxu0 0.0
    %295 = vmatpush2.msra.mxu0 0.0
    %296 = vmatprep.subr.mxu0 0.0
    %297 = vmatpush2.msra.mxu0 0.0
    %298 = vmatprep.subr.mxu0 0.0
    %299 = vmatpush2.msra.mxu0 0.0
    %300 = vmatprep.subr.mxu0 0.0
    %301 = vmatpush2.msra.mxu0 0.0
    %302 = vmatprep.subr.mxu0 0.0
    %303 = vmatpush2.msra.mxu0 0.0
    %304 = vmatprep.subr.mxu0 0.0
    %305 = vmatpush2.msra.mxu0 0.0
    %306 = vmatprep.subr.mxu0 0.0
    %307 = vmatpush2.msra.mxu0 0.0
    %308 = vmatprep.subr.mxu0 0.0
    %309 = vmatpush2.msra.mxu0 0.0
    %310 = vmatprep.subr.mxu0 0.0
    %311 = vmatpush2.msra.mxu0 0.0
    %312 = vmatprep.subr.mxu0 0.0
    %313 = vmatpush2.msra.mxu0 0.0
    %314 = vmatprep.subr.mxu0 0.0
    %315 = vmatpush2.msra.mxu0 0.0
    %316 = vmatprep.subr.mxu0 0.0
    %317 = vmatpush2.msra.mxu0 0.0
    %318 = vmatprep.subr.mxu0 0.0
    %319 = vmatpush2.msra.mxu0 0.0
    %320 = vmatprep.subr.mxu0 0.0
    %321 = vmatpush2.msra.mxu0 0.0
    %322 = vmatprep.subr.mxu0 0.0
    %323 = vmatpush2.msra.mxu0 0.0
    %324 = vmatprep.subr.mxu0 0.0
    %325 = vmatpush2.msra.mxu0 0.0
    %326 = vmatprep.mubr.f32.mxu0 0.0
    %327 = vmatmul.mubr.f32.gmra.mxu0 %v260
    %v328 = vpop.f32.mrf.mxu0
    %v329 = vadd.f32 0.0, %v328
    %v330 = vpop.f32.mrf.mxu0
    %331 = vdwg.mxu0
    %332 = vst.msk [vmem:[#allocation11] sm:$0xff] %vm103, %v329
    // Predicated region
    $region42: #{logic_or_forward.1} parent=1 // pred_check
      _
    $region43: #{logic_or_forward.1} parent=1 // pred_check_branch
      %334 = sbr.rel (0) target = $region45
    $region44: #{logic_or_forward.1} parent=1 // pred_region
      %s336 = ssub.s32 128, 128
      %337 = vsyncadd [#allocation4], %s336
      %s339 = sshll.u32 [#allocation11], 4
      %s340 = int_to_ptr.vmem [resolvable:$true] %s339
      %342 = dma.vmem_to_hbm [thread:$0]  %s340, 128, %s5, [#allocation4]
    $region45: #{logic_or_forward.1} parent=1 // pred_fallthru
      _
    // Predicated region
    $region46: #{logic_or_forward.1} parent=1 // pred_check
      _
    $region47: #{logic_or_forward.1} parent=1 // pred_check_branch
      %344 = sbr.rel (0) target = $region49
    $region48: #{logic_or_forward.1} parent=1 // pred_region
      %345 = dma.done [#allocation4], 128
    $region49: #{logic_or_forward.1} parent=1 // pred_fallthru
      _
    %346 = vsyncpa [#allocation3], 1
    %347 = vsyncpa [#allocation6], 1
    %348 = vsyncpa [#allocation9], 1
    %349 = vsyncpa [#allocation4], 1

</llo_original>
